<compile_context>
chip_gen: v5e
topology: v5e:2x2
jax: 0.10.0
libtpu: 0.0.40
codegen_flags: <defaults>
</compile_context>

<pallas_src>
import functools

import jax
import jax.numpy as jnp
from jax.experimental import pallas as pl
from jax.experimental.pallas import tpu as pltpu


def _scale_tile_kernel(log_std_ref, scale_ref, *, reps):
    # exp of a tiny (1, A) row rides the otherwise-idle EUP slot.
    std_row = jnp.exp(log_std_ref[...]).astype(scale_ref.dtype)   # (1, A)
    lane_row = jnp.tile(std_row, (1, reps))                       # (1, lanes)
    # broadcast over the sublane (row) axis of this tile; done once per tile.
    scale_ref[...] = jnp.broadcast_to(lane_row, scale_ref.shape)


def _pick_row_tile(rows):
    # Full array if small; otherwise 512-row tiles when they divide evenly.
    if rows <= 1024:
        return rows
    if rows % 512 == 0:
        return 512
    # TODO(synk): pad `rows` to a multiple of 512 for odd large shapes.
    return rows


def ppo_forward(mu, log_std):
    """Returns (loc, scale) of the Normal produced by PPO.forward."""
    B, A = mu.shape
    assert log_std.shape == (1, A)

    # loc = mu: pure passthrough, never touches the kernel (zero copies).
    loc = mu
    out_dtype = mu.dtype

    lane_dense = (A <= 128) and (128 % A == 0) and ((B * A) % 128 == 0)

    if lane_dense:
        # Present scale as (rows, 128): every store vreg is fully lane-dense.
        reps = 128 // A
        rows = (B * A) // 128
        tb = _pick_row_tile(rows)
        grid = (rows // tb,)
        scale_flat = pl.pallas_call(
            functools.partial(_scale_tile_kernel, reps=reps),
            out_shape=jax.ShapeDtypeStruct((rows, 128), out_dtype),
            grid_spec=pltpu.PrefetchScalarGridSpec(
                num_scalar_prefetch=0,
                grid=grid,
                in_specs=[pl.BlockSpec((1, A), lambda i: (0, 0))],
                out_specs=pl.BlockSpec((tb, 128), lambda i: (i, 0)),
            ),
            compiler_params=pltpu.CompilerParams(
                dimension_semantics=("parallel",),
            ),
        )(log_std)
        # Row-major reshape back to (B, A); since A | 128 this is exact.
        scale = scale_flat.reshape(B, A)
    else:
        # Fallback: tile the batch axis directly with (tb, A) blocks.
        tb = _pick_row_tile(B)
        grid = (B // tb,)
        scale = pl.pallas_call(
            functools.partial(_scale_tile_kernel, reps=1),
            out_shape=jax.ShapeDtypeStruct((B, A), out_dtype),
            grid_spec=pltpu.PrefetchScalarGridSpec(
                num_scalar_prefetch=0,
                grid=grid,
                in_specs=[pl.BlockSpec((1, A), lambda i: (0, 0))],
                out_specs=pl.BlockSpec((tb, A), lambda i: (i, 0)),
            ),
            compiler_params=pltpu.CompilerParams(
                dimension_semantics=("parallel",),
            ),
        )(log_std)

    return loc, scale


if __name__ == "__main__":
    key = jax.random.PRNGKey(0)
    k_mu, k_ls = jax.random.split(key)

    batch = 8
    action_size = 32

    # Mirror nn.Parameter(torch.zeros(1, action_size)) at init.
    log_std_zeros = jnp.zeros((1, action_size), dtype=jnp.float32)
    # Also exercise the exp path with a non-trivial log_std.
    log_std_rand = 0.1 * jax.random.normal(k_ls, (1, action_size), jnp.float32)

    mu = jax.random.normal(k_mu, (batch, action_size), dtype=jnp.float32)

    for log_std in (log_std_zeros, log_std_rand):
        loc, scale = ppo_forward(mu, log_std)
        loc = jax.block_until_ready(loc)
        scale = jax.block_until_ready(scale)

        # Reference: std = log_std.exp().expand_as(mu); dist = Normal(mu, std)
        ref_scale = jnp.broadcast_to(jnp.exp(log_std), mu.shape)
        assert jnp.allclose(loc, mu), "loc mismatch"
        assert jnp.allclose(scale, ref_scale, rtol=1e-6, atol=1e-6), "scale mismatch"

    print("KERNEL_OK")
</pallas_src>

<mosaic_0001>
module attributes {stable_mosaic.version = 11 : i64} {
  func.func @_scale_tile_kernel(%arg0: i32, %arg1: memref<1x32xf32, #tpu.memory_space<vmem>>, %arg2: memref<2x128xf32, #tpu.memory_space<vmem>>) attributes {dimension_semantics = [#tpu.dimension_semantics<parallel>], iteration_bounds = array<i64: 1>, scalar_prefetch = 0 : i64, scratch_operands = 0 : i64, tpu.core_type = #tpu.core_type<tc>, window_params = [{pipeline_mode = #tpu.pipeline_mode<synchronous>, transform_indices = @transform_0, window_bounds = array<i64: 1, 32>}, {transform_indices = @transform_1, window_bounds = array<i64: 2, 128>}]} {
    %c0 = arith.constant 0 : index
    %c0_0 = arith.constant 0 : index
    %0 = vector.load %arg1[%c0, %c0_0] : memref<1x32xf32, #tpu.memory_space<vmem>>, vector<1x32xf32>
    %1 = math.exp %0 : vector<1x32xf32>
    %2 = tpu.concatenate %1, %1, %1, %1 in 1 : vector<1x32xf32>, vector<1x32xf32>, vector<1x32xf32>, vector<1x32xf32> -> vector<1x128xf32>
    %3 = vector.shape_cast %2 : vector<1x128xf32> to vector<1x128xf32>
    %4 = vector.broadcast %3 : vector<1x128xf32> to vector<2x128xf32>
    %c0_1 = arith.constant 0 : index
    %c0_2 = arith.constant 0 : index
    %5 = vector.load %arg2[%c0_1, %c0_2] : memref<2x128xf32, #tpu.memory_space<vmem>>, vector<2x128xf32>
    tpu.vector_store %arg2[%c0_1, %c0_2], %4 {strides = array<i32>} : memref<2x128xf32, #tpu.memory_space<vmem>>, vector<2x128xf32>,
    return
  }
  func.func @transform_0(%arg0: i32) -> (i32, i32) {
    %c0_i32 = arith.constant 0 : i32
    %c0_i32_0 = arith.constant 0 : i32
    %c0_i32_1 = arith.constant 0 : i32
    return %c0_i32, %c0_i32_0 : i32, i32
  }
  func.func @transform_1(%arg0: i32) -> (i32, i32) {
    %c0_i32 = arith.constant 0 : i32
    %c0_i32_0 = arith.constant 0 : i32
    return %arg0, %c0_i32 : i32, i32
  }
}

</mosaic_0001>

<llo_original>
// kernel: tpu_custom_call.1
$region0: #{tpu_custom_call.1}
  #allocation0 [shape = 'u32[]', space=smem, size = 0x4, offset = 0x4, fixed_abs, tag = 'smem constant byte address 0x4 - core index']
  #allocation1 [shape = 'u32[72,128]{1,0:T(1,128)}', space=vmem, size = 0x9000, scoped, tag = 'internal scratch']
  %s0 = inlined_call_operand.hbm [shape: f32[1,32], index: 0, kind: input, shape index: {}]
  %s1 = inlined_call_operand.hbm [shape: f32[2,128], index: 1, kind: output, shape index: {}]
  %s2 = sld [smem:[#allocation0]]
  $region18: #{tpu_custom_call.1} parent=0
    _
  %s4 = ssub.s32 1, %s2
  %s5 = scalar_select 0, %s4, %s2
  $region1: #{tpu_custom_call.1} parent=0
    #allocation2 [shape = 'u8[512]{0}', space=vmem, size = 0x400, scoped, tag = 'input window, operand 0, single buffered']
    #allocation3 [shape = 's32[1]{0}', space=sflag, size = 0x4, scoped, tag = 'scoped memory for tpu_custom_call.1']
    #allocation4 [shape = 's32[1]{0}', space=sflag, size = 0x4, scoped, tag = 'scoped memory for tpu_custom_call.1']
    #allocation5 [shape = 'u8[1024]{0}', space=vmem, size = 0x400, scoped, tag = 'output window, operand 0, single buffered']
    %6 = vsyncpa [#allocation3], 0
    %7 = vsyncpa [#allocation4], 0
    // Predicated region
    $region2: #{tpu_custom_call.1} parent=1 // pred_check
      _
    $region3: #{tpu_custom_call.1} parent=1 // pred_check_branch
      %9 = sbr.rel (0) target = $region5
    $region4: #{tpu_custom_call.1} parent=1 // pred_region
      %11 = vsyncadd [#allocation3], 0
      %s13 = sshll.u32 %s0, 4
      %s14 = int_to_ptr.hbm [resolvable:$true] %s13
      %s15 = sshll.u32 [#allocation2], 4
      %s16 = int_to_ptr.vmem [resolvable:$true] %s15
      %18 = dma.hbm_to_vmem [thread:$0]  %s14, 16, %s16, [#allocation3]
    $region5: #{tpu_custom_call.1} parent=1 // pred_fallthru
      _
    // Predicated region
    $region6: #{tpu_custom_call.1} parent=1 // pred_check
      _
    $region7: #{tpu_custom_call.1} parent=1 // pred_check_branch
      %20 = sbr.rel (0) target = $region9
    $region8: #{tpu_custom_call.1} parent=1 // pred_region
      %22 = dma.done [#allocation3], 16
    $region9: #{tpu_custom_call.1} parent=1 // pred_fallthru
      _
    %v23 = vld [vmem:[#allocation2] sm:$0x1]
    %v24 = vmul.f32 %v23, 1.442695
    %v25 = vpow.pop %v24
    %v27 = vperm.slane %v25, 0
    %28 = vrot.lane.b32.xlu0 %v27, 32
    %v29 = vpop.permute.xlu0 %28
    %31 = vrot.lane.b32.xlu0 %v27, 64
    %v32 = vpop.permute.xlu0 %31
    %34 = vrot.lane.b32.xlu0 %v27, 96
    %v35 = vpop.permute.xlu0 %34
    %vm37 = vcmask 261120
    %v38 = vsel %vm37, %v25, %v29
    %vm39 = vcmask 523264
    %v40 = vsel %vm39, %v38, %v32
    %vm41 = vcmask 785408
    %v42 = vsel %vm41, %v40, %v35
    %v43 = vperm.slane %v42, 0
    %44 = vst [vmem:[#allocation5] sm:$0x3] %v43
    // Predicated region
    $region10: #{tpu_custom_call.1} parent=1 // pred_check
      _
    $region11: #{tpu_custom_call.1} parent=1 // pred_check_branch
      %46 = sbr.rel (0) target = $region13
    $region12: #{tpu_custom_call.1} parent=1 // pred_region
      %48 = vsyncadd [#allocation4], 0
      %s50 = sshll.u32 [#allocation5], 4
      %s51 = int_to_ptr.vmem [resolvable:$true] %s50
      %s52 = sshll.u32 %s1, 4
      %s53 = int_to_ptr.hbm [resolvable:$true] %s52
      %55 = dma.vmem_to_hbm [thread:$0]  %s51, 32, %s53, [#allocation4]
    $region13: #{tpu_custom_call.1} parent=1 // pred_fallthru
      _
    // Predicated region
    $region14: #{tpu_custom_call.1} parent=1 // pred_check
      _
    $region15: #{tpu_custom_call.1} parent=1 // pred_check_branch
      %57 = sbr.rel (0) target = $region17
    $region16: #{tpu_custom_call.1} parent=1 // pred_region
      %59 = dma.done [#allocation4], 32
    $region17: #{tpu_custom_call.1} parent=1 // pred_fallthru
      _
    %60 = vsyncpa [#allocation3], 1
    %61 = vsyncpa [#allocation4], 1

</llo_original>
